<compile_context>
chip_gen: v6e
topology: v6e:2x2x1
jax: 0.10.0
libtpu: 0.0.40
codegen_flags: <defaults>
</compile_context>

<pallas_src>
import functools

import numpy as np
import jax
import jax.numpy as jnp
from jax.experimental import pallas as pl
from jax.experimental.pallas import tpu as pltpu


def _pos_enc_kernel(params_ref, o_ref):
    """Write one (R, C) tile of the positional-encoding table.

    params_ref: (2, C) f32 in VMEM.
      row 0: scale[lane] = pos_per_row * inv_denom(col)        (col = lane % d_model)
      row 1: phase[lane] = (lane // d_model) * inv_denom(col) + (col % 2) * pi/2
    o_ref:      (R, C) f32 output tile.

    angle(row, lane) = row * scale[lane] + phase[lane]
                     = position * inv_denom + (pi/2 on odd columns)
    so a single sin per element covers both sin (even cols) and cos (odd cols).
    """
    R, C = o_ref.shape
    row0 = pl.program_id(0) * R
    row = (jax.lax.broadcasted_iota(jnp.int32, (R, C), 0) + row0).astype(jnp.float32)
    scale = params_ref[pl.ds(0, 1), :]   # (1, C)
    phase = params_ref[pl.ds(1, 1), :]   # (1, C)
    o_ref[...] = jnp.sin(row * scale + phase)


def _build_params(d_model: int, cols: int, pos_per_row: int) -> jnp.ndarray:
    """(2, cols) f32 per-lane constants, computed once at build time."""
    lane = np.arange(cols)
    col = lane % d_model
    base = (col // 2).astype(np.float64) * 2.0
    inv_denom = np.power(10000.0, -base / float(d_model))
    phase = (col % 2).astype(np.float64) * (np.pi / 2.0)
    lane_pos = (lane // d_model).astype(np.float64)
    scale = float(pos_per_row) * inv_denom
    phase2 = phase + lane_pos * inv_denom
    return jnp.asarray(np.stack([scale, phase2]).astype(np.float32))


def _choose_tile_rows(rows: int, cols: int, max_tile_rows: int) -> int:
    """Row-tile size: big enough to amortize per-grid-step overhead, small
    enough that the double-buffered output stays under every generation's
    scoped VMEM (~6 MiB/buffer -> 12 MiB live, safe on v5e/v6e/v7x)."""
    bytes_per_row = cols * 4
    ts_cap = max(8, ((6 * 1024 * 1024) // bytes_per_row) // 8 * 8)
    ts = min(max_tile_rows, ts_cap)
    if rows <= ts:
        if rows >= 16:
            # Split into >= 2 blocks so ("parallel",) can shard across both
            # v7x TensorCores (no effect on single-TC v5e/v6e).
            ts = max(8, ((pl.cdiv(rows, 2) + 7) // 8) * 8)
        else:
            ts = rows  # single block == full array dims (allowed)
    return ts


@functools.lru_cache(maxsize=None)
def make_pos_enc_table(context_size: int, d_model: int,
                       max_tile_rows: int = 8192) -> jax.Array:
    """Build the full (context_size, d_model) positional-encoding table once.

    Cached per (context_size, d_model), mirroring the PyTorch buffer built in
    __init__; forward only slices it.
    """
    assert d_model % 2 == 0, "d_model must be even (same assumption as the PyTorch code)"

    # Lane-dense layout: pack several positions per 128-lane row so stores are
    # full unmasked vst (instead of masked partial stores when d_model < 128).
    lane_dense = (d_model < 128) and (128 % d_model == 0)
    if lane_dense:
        pos_per_row = 128 // d_model
        cols = 128
        rows = pl.cdiv(context_size, pos_per_row)   # pad positions up, slice later
    else:
        pos_per_row = 1
        cols = d_model
        rows = context_size

    ts = _choose_tile_rows(rows, cols, max_tile_rows)
    grid = (pl.cdiv(rows, ts),)
    params = _build_params(d_model, cols, pos_per_row)

    out = pl.pallas_call(
        _pos_enc_kernel,
        out_shape=jax.ShapeDtypeStruct((rows, cols), jnp.float32),
        grid=grid,
        in_specs=[pl.BlockSpec((2, cols), lambda i: (0, 0))],
        out_specs=pl.BlockSpec((ts, cols), lambda i: (i, 0)),
        compiler_params=pltpu.CompilerParams(
            dimension_semantics=("parallel",)),
    )(params)

    if lane_dense:
        out = out.reshape(rows * pos_per_row, d_model)[:context_size]
    return out


def positional_encoding_forward(x, context_size: int, d_model: int,
                                drop_prob: float = 0.1):
    """Equivalent of PositionalEncoding(context_size, d_model).forward(x)."""
    # TODO(synk): nn.Dropout(drop_prob) is defined in __init__ but never applied
    # in forward, so it is intentionally omitted here.
    seq = x.shape[1]
    assert seq <= context_size, "sequence length exceeds context_size"
    return make_pos_enc_table(context_size, d_model)[:seq]


def _reference_pos_enc(context_size: int, d_model: int) -> np.ndarray:
    """Pure NumPy (float32) replica of the PyTorch buffer construction."""
    pos_enc = np.zeros((context_size, d_model), dtype=np.float32)
    position = np.arange(0, context_size, dtype=np.float32)[:, None]
    denominator = np.power(
        np.float32(10000.0),
        np.arange(0, d_model, 2, dtype=np.float32) / np.float32(d_model))
    pos_enc[:, 0::2] = np.sin(position / denominator)
    pos_enc[:, 1::2] = np.cos(position / denominator)
    return pos_enc


if __name__ == "__main__":
    context_size = 16
    d_model = 32
    batch, seq = 2, 8

    key = jax.random.PRNGKey(0)
    x = jax.random.normal(key, (batch, seq, d_model), dtype=jnp.float32)

    out = positional_encoding_forward(x, context_size, d_model)
    out = jax.block_until_ready(out)

    ref = _reference_pos_enc(context_size, d_model)[:seq]
    np.testing.assert_allclose(np.asarray(out), ref, rtol=1e-5, atol=1e-5)
    assert out.shape == (seq, d_model)
    assert out.dtype == jnp.float32

    # Second call hits the cache (no new pallas_call), must still be correct.
    out2 = jax.block_until_ready(positional_encoding_forward(x, context_size, d_model))
    np.testing.assert_allclose(np.asarray(out2), ref, rtol=1e-5, atol=1e-5)

    print("KERNEL_OK")
</pallas_src>

<mosaic_0001>
module attributes {stable_mosaic.version = 11 : i64} {
  func.func @_pos_enc_kernel(%arg0: i32, %arg1: memref<2x128xf32, #tpu.memory_space<vmem>>, %arg2: memref<4x128xf32, #tpu.memory_space<vmem>>) attributes {dimension_semantics = [#tpu.dimension_semantics<parallel>], iteration_bounds = array<i64: 1>, scalar_prefetch = 0 : i64, scratch_operands = 0 : i64, tpu.core_type = #tpu.core_type<tc>, window_params = [{pipeline_mode = #tpu.pipeline_mode<synchronous>, transform_indices = @transform_0, window_bounds = array<i64: 2, 128>}, {transform_indices = @transform_1, window_bounds = array<i64: 4, 128>}]} {
    %c4_i32 = arith.constant 4 : i32
    %0 = arith.muli %arg0, %c4_i32 : i32
    %1 = tpu.iota {dimensions = array<i32: 0>} : vector<4x128xi32>
    %2 = vector.broadcast %0 : i32 to vector<4x128xi32>
    %3 = arith.addi %1, %2 : vector<4x128xi32>
    %4 = arith.sitofp %3 : vector<4x128xi32> to vector<4x128xf32>
    %c0 = arith.constant 0 : index
    %c0_0 = arith.constant 0 : index
    %5 = vector.load %arg1[%c0, %c0_0] : memref<2x128xf32, #tpu.memory_space<vmem>>, vector<1x128xf32>
    %c1 = arith.constant 1 : index
    %c0_1 = arith.constant 0 : index
    %6 = vector.load %arg1[%c1, %c0_1] : memref<2x128xf32, #tpu.memory_space<vmem>>, vector<1x128xf32>
    %7 = vector.broadcast %5 : vector<1x128xf32> to vector<4x128xf32>
    %8 = arith.mulf %4, %7 : vector<4x128xf32>
    %9 = vector.broadcast %6 : vector<1x128xf32> to vector<4x128xf32>
    %10 = arith.addf %8, %9 : vector<4x128xf32>
    %11 = math.sin %10 : vector<4x128xf32>
    %c0_2 = arith.constant 0 : index
    %c0_3 = arith.constant 0 : index
    %12 = vector.load %arg2[%c0_2, %c0_3] : memref<4x128xf32, #tpu.memory_space<vmem>>, vector<4x128xf32>
    tpu.vector_store %arg2[%c0_2, %c0_3], %11 {strides = array<i32>} : memref<4x128xf32, #tpu.memory_space<vmem>>, vector<4x128xf32>,
    return
  }
  func.func @transform_0(%arg0: i32) -> (i32, i32) {
    %c0_i32 = arith.constant 0 : i32
    %c0_i32_0 = arith.constant 0 : i32
    %c0_i32_1 = arith.constant 0 : i32
    return %c0_i32, %c0_i32_0 : i32, i32
  }
  func.func @transform_1(%arg0: i32) -> (i32, i32) {
    %c0_i32 = arith.constant 0 : i32
    %c0_i32_0 = arith.constant 0 : i32
    return %arg0, %c0_i32 : i32, i32
  }
}

</mosaic_0001>

<llo_original>
// kernel: tpu_custom_call.1
$region0: #{tpu_custom_call.1}
  #allocation0 [shape = 'u32[]', space=smem, size = 0x4, offset = 0x4, fixed_abs, tag = 'smem constant byte address 0x4 - core index']
  #allocation1 [shape = 'u32[144,128]{1,0:T(1,128)}', space=vmem, size = 0x12000, scoped, tag = 'internal scratch']
  %s0 = inlined_call_operand.hbm [shape: f32[2,128], index: 0, kind: input, shape index: {}]
  %s1 = inlined_call_operand.hbm [shape: f32[4,128], index: 1, kind: output, shape index: {}]
  %s2 = sld [smem:[#allocation0]]
  $region18: #{tpu_custom_call.1} parent=0
    _
  %s4 = ssub.s32 1, %s2
  %s5 = scalar_select 0, %s4, %s2
  $region1: #{tpu_custom_call.1} parent=0
    #allocation2 [shape = 'u8[1024]{0}', space=vmem, size = 0x400, scoped, tag = 'input window, operand 0, single buffered']
    #allocation3 [shape = 's32[1]{0}', space=sflag, size = 0x4, scoped, tag = 'scoped memory for tpu_custom_call.1']
    #allocation4 [shape = 's32[1]{0}', space=sflag, size = 0x4, scoped, tag = 'scoped memory for tpu_custom_call.1']
    #allocation5 [shape = 'u8[2048]{0}', space=vmem, size = 0x800, scoped, tag = 'output window, operand 0, single buffered']
    %6 = vsyncpa [#allocation3], 0
    %7 = vsyncpa [#allocation4], 0
    // Predicated region
    $region2: #{tpu_custom_call.1} parent=1 // pred_check
      _
    $region3: #{tpu_custom_call.1} parent=1 // pred_check_branch
      %9 = sbr.rel (0) target = $region5
    $region4: #{tpu_custom_call.1} parent=1 // pred_region
      %s11 = ssub.s32 32, 32
      %12 = vsyncadd [#allocation3], %s11
      %s14 = sshll.u32 [#allocation2], 4
      %s15 = int_to_ptr.vmem [resolvable:$true] %s14
      %17 = dma.hbm_to_vmem [thread:$0]  %s0, 32, %s15, [#allocation3]
    $region5: #{tpu_custom_call.1} parent=1 // pred_fallthru
      _
    // Predicated region
    $region6: #{tpu_custom_call.1} parent=1 // pred_check
      _
    $region7: #{tpu_custom_call.1} parent=1 // pred_check_branch
      %19 = sbr.rel (0) target = $region9
    $region8: #{tpu_custom_call.1} parent=1 // pred_region
      %20 = dma.done [#allocation3], 32
    $region9: #{tpu_custom_call.1} parent=1 // pred_fallthru
      _
    %s21 = smul.u32 0, 4
    %v22 = vlaneseq
    %v23 = vshrl.u32 %v22, 7
    %v24 = vstv %s21
    %v25 = vadd.s32 %v23, %v24
    %v26 = vcvt.s32.f32 %v25
    %v27 = vld [vmem:[#allocation2] sm:$0x1]
    %v28 = vld [vmem:[#allocation2 + $0x1] sm:$0x1]
    %v29 = vlaneseq
    %v30 = vshrl.u32 %v29, 7
    %v31 = vsub.s32 0, %v30
    %v32 = vrot.slane %v27, %v31
    %v33 = vmul.f32 %v26, %v32
    %v34 = vlaneseq
    %v35 = vshrl.u32 %v34, 7
    %v36 = vsub.s32 0, %v35
    %v37 = vrot.slane %v28, %v36
    %v38 = vadd.f32 %v33, %v37
    %v39 = vand.u32 2147483647, %v38
    %vm40 = vcmp.le.f32.partialorder %v39, 0.7853982
    %vm41 = vcmp.lt.s32.totalorder %v38, 0
    %v42 = vand.u32 %v38, 2139095040
    %v43 = vshrl.u32 %v42, 23
    %v44 = vsub.s32 %v43, 127
    %v45 = vand.u32 2147483647, %v38
    %v46 = vand.u32 %v45, 8388607
    %v47 = vor.u32 %v46, 8388608
    %v48 = vsub.s32 0, %v47
    %v49 = vadd.s32 %v44, 1
    %vm50 = vcmp.gt.s32.totalorder %v49, 0
    %v51 = vsel %vm50, %v49, 0
    %v52 = vshrl.u32 %v51, 5
    %v53 = vand.u32 %v51, 31
    %v54 = vsub.s32 32, %v53
    %v55 = vshrl.u32 683565275, %v54
    %v56 = vshll.u32 683565275, %v53
    %v57 = vshrl.u32 2475754826, %v54
    %v58 = vor.u32 %v56, %v57
    %v59 = vshll.u32 2475754826, %v53
    %v60 = vshrl.u32 2131351028, %v54
    %v61 = vor.u32 %v59, %v60
    %v62 = vshll.u32 2131351028, %v53
    %v63 = vshrl.u32 2102212464, %v54
    %v64 = vor.u32 %v62, %v63
    %v65 = vshll.u32 2102212464, %v53
    %v66 = vshrl.u32 920167782, %v54
    %v67 = vor.u32 %v65, %v66
    %v68 = vshll.u32 920167782, %v53
    %v69 = vshrl.u32 1326507024, %v54
    %v70 = vor.u32 %v68, %v69
    %vm71 = vcmp.lt.s32.totalorder %v52, 1
    %vm72 = vcmp.lt.s32.totalorder %v52, 2
    %vm73 = vcmp.lt.s32.totalorder %v52, 3
    %vm74 = vcmp.lt.s32.totalorder %v52, 4
    %v75 = vsel %vm71, %v55, %v58
    %v76 = vsel %vm74, %v64, 2102212464
    %v77 = vsel %vm73, %v61, %v76
    %v78 = vsel %vm72, %v75, %v77
    %v79 = vsel %vm71, %v58, %v61
    %v80 = vsel %vm74, %v67, 920167782
    %v81 = vsel %vm73, %v64, %v80
    %v82 = vsel %vm72, %v79, %v81
    %v83 = vsel %vm71, %v61, %v64
    %v84 = vsel %vm74, %v70, 1326507024
    %v85 = vsel %vm73, %v67, %v84
    %v86 = vsel %vm72, %v83, %v85
    %v87 = vshll.u32 %v47, 8
    %v88 = vmul.u32.u64.compose %v87, %v86
    %v89 = vextract.low.u32 %v88
    %v90 = vextract.high.u32 %v88
    %v91 = vmul.u32.u64.compose %v87, %v82
    %v92 = vextract.low.u32 %v91
    %v93 = vextract.high.u32 %v91
    %v94 = vmul.u32 %v87, %v78
    %v95 = vadd.s32 %v90, %v92
    %vm96 = vc.u32 %v90, %v92
    %v97 = vadd.s32 %v93, 1
    %v98 = vsel %vm96, %v97, %v93
    %v99 = vadd.s32 %v94, %v98
    %v100 = vadd.s32 %v99, 536870912
    %v101 = vshrl.u32 %v100, 30
    %v102 = vshll.u32 %v101, 30
    %v103 = vsub.s32 %v99, %v102
    %vm104 = vcmp.lt.s32.totalorder %v103, 0
    %v105 = vsub.s32 0, %v103
    %v106 = vsel %vm104, %v105, %v103
    %v107 = vclz %v106
    %v108 = vsub.s32 %v107, 2
    %vm109 = vcmp.gt.s32.totalorder 0, %v108
    %v110 = vsel %vm109, 0, %v108
    %v111 = vsub.s32 32, %v110
    %v112 = vshll.u32 %v103, %v110
    %v113 = vshrl.u32 %v95, %v111
    %v114 = vor.u32 %v112, %v113
    %v115 = vsub.s32 4294967266, %v110
    %v116 = vadd.s32 %v115, 127
    %v117 = vshll.u32 %v116, 23
    %v118 = vor.u32 4788187, %v117
    %v119 = vand.u32 2147483647, %v118
    %v121 = vcvt.s32.f32 %v114
    %v122 = vmul.f32 %v121, %v119
    %v123 = vxor.u32 %v122, 2147483648
    %v124 = vsel %vm41, %v123, %v122
    %v125 = vsub.s32 4, %v101
    %v126 = vsel %vm41, %v125, %v101
    %v127 = vsel %vm40, %v38, %v124
    %v128 = vsel %vm40, 0, %v126
    %v129 = vcosq.f32.pop %v127
    %v130 = vsinq.f32.pop %v127
    %vm131 = vweird.f32 %v38
    %v132 = vadd.s32 %v128, 3
    %v133 = vand.u32 %v132, 3
    %vm134 = vcmp.lt.s32.totalorder %v133, 2
    %vm135 = vcmp.eq.s32.totalorder %v133, 0
    %v136 = vxor.u32 %v130, 2147483648
    %v137 = vsel %vm135, %v129, %v136
    %vm138 = vcmp.eq.s32.totalorder %v133, 2
    %v139 = vxor.u32 %v129, 2147483648
    %v140 = vsel %vm138, %v139, %v130
    %v141 = vsel %vm134, %v137, %v140
    %v142 = vsel %vm131, nan, %v141
    %143 = vst [vmem:[#allocation5] sm:$0xf] %v142
    // Predicated region
    $region10: #{tpu_custom_call.1} parent=1 // pred_check
      _
    $region11: #{tpu_custom_call.1} parent=1 // pred_check_branch
      %145 = sbr.rel (0) target = $region13
    $region12: #{tpu_custom_call.1} parent=1 // pred_region
      %s147 = ssub.s32 64, 64
      %148 = vsyncadd [#allocation4], %s147
      %s150 = sshll.u32 [#allocation5], 4
      %s151 = int_to_ptr.vmem [resolvable:$true] %s150
      %153 = dma.vmem_to_hbm [thread:$0]  %s151, 64, %s1, [#allocation4]
    $region13: #{tpu_custom_call.1} parent=1 // pred_fallthru
      _
    // Predicated region
    $region14: #{tpu_custom_call.1} parent=1 // pred_check
      _
    $region15: #{tpu_custom_call.1} parent=1 // pred_check_branch
      %155 = sbr.rel (0) target = $region17
    $region16: #{tpu_custom_call.1} parent=1 // pred_region
      %156 = dma.done [#allocation4], 64
    $region17: #{tpu_custom_call.1} parent=1 // pred_fallthru
      _
    %157 = vsyncpa [#allocation3], 1
    %158 = vsyncpa [#allocation4], 1

</llo_original>
